<compile_context>
chip_gen: v7x
topology: tpu7x:2x2x1
jax: 0.10.0
libtpu: 0.0.40
codegen_flags: <defaults>
</compile_context>

<pallas_src>
import functools

import jax
import jax.numpy as jnp
from jax.experimental import pallas as pl
from jax.experimental.pallas import tpu as pltpu


def _round_up(x, m):
    return (x + m - 1) // m * m


# ---------------------------------------------------------------------------
# Kernel: one grid step == one timestep (for one batch tile).
# ---------------------------------------------------------------------------
def _lstm_seq_kernel(x_ref, h0_ref, c0_ref, wg_ref, bg_ref, wfc_ref, bfc_ref,
                     out_ref, h_ref, c_ref, comb_ref, *, ip, hp):
    t = pl.program_id(1)

    # Initialize the VMEM-resident state carry at the first timestep.
    @pl.when(t == 0)
    def _():
        h_ref[...] = h0_ref[...]
        c_ref[...] = c0_ref[...]

    # combined = [x_t, h_{t-1}]  (ip and hp are multiples of 128 -> lane-aligned)
    comb_ref[:, :ip] = x_ref[0]
    comb_ref[:, ip:] = h_ref[...]

    # Single fused gate matmul on the MXU: (B, ip+hp) @ (ip+hp, 4*hp).
    gates = jnp.dot(comb_ref[...], wg_ref[...],
                    preferred_element_type=jnp.float32) + bg_ref[...]

    # PyTorch LSTMCell gate order: input, forget, cell(candidate), output.
    i_g = jax.nn.sigmoid(gates[:, 0 * hp:1 * hp])
    f_g = jax.nn.sigmoid(gates[:, 1 * hp:2 * hp])
    g_g = jnp.tanh(gates[:, 2 * hp:3 * hp])
    o_g = jax.nn.sigmoid(gates[:, 3 * hp:4 * hp])

    c_new = f_g * c_ref[...] + i_g * g_g
    h_new = o_g * jnp.tanh(c_new)
    c_ref[...] = c_new
    h_ref[...] = h_new

    # output_t = fc([x_t, h_t])  -- reuse the combined buffer with the new h.
    comb_ref[:, ip:] = h_new
    out_ref[0] = (jnp.dot(comb_ref[...], wfc_ref[...],
                          preferred_element_type=jnp.float32) + bfc_ref[...])


# ---------------------------------------------------------------------------
# Parameter init (PyTorch-style defaults) + one-time layout prep.
# ---------------------------------------------------------------------------
def init_lstm_params(key, input_size, hidden_size, output_size):
    k = jax.random.split(key, 6)
    bd_l = 1.0 / jnp.sqrt(jnp.float32(hidden_size))
    bd_f = 1.0 / jnp.sqrt(jnp.float32(input_size + hidden_size))
    return {
        "w_ih": jax.random.uniform(k[0], (4 * hidden_size, input_size),
                                   jnp.float32, -bd_l, bd_l),
        "w_hh": jax.random.uniform(k[1], (4 * hidden_size, hidden_size),
                                   jnp.float32, -bd_l, bd_l),
        "b_ih": jax.random.uniform(k[2], (4 * hidden_size,), jnp.float32,
                                   -bd_l, bd_l),
        "b_hh": jax.random.uniform(k[3], (4 * hidden_size,), jnp.float32,
                                   -bd_l, bd_l),
        "w_fc": jax.random.uniform(k[4], (output_size, input_size + hidden_size),
                                   jnp.float32, -bd_f, bd_f),
        "b_fc": jax.random.uniform(k[5], (output_size,), jnp.float32,
                                   -bd_f, bd_f),
    }


def prepare_lstm_params(params, input_size, hidden_size, output_size, lane=128):
    """One-time transpose + zero-pad of all weights into kernel layout."""
    I, H, O = input_size, hidden_size, output_size
    Ip = _round_up(max(I, 1), lane)
    Hp = _round_up(max(H, 1), lane)
    Op = _round_up(max(O, 1), lane)

    w_ih, w_hh = params["w_ih"], params["w_hh"]
    b_gate = params["b_ih"] + params["b_hh"]          # LSTMCell adds both biases

    # Fused gate weight: rows [0:I) act on x, rows [Ip:Ip+H) act on h_{t-1};
    # each gate k occupies lane-aligned columns [k*Hp, k*Hp+H). Padding is zero,
    # so padded hidden lanes stay exactly zero through time.
    wg = jnp.zeros((Ip + Hp, 4 * Hp), jnp.float32)
    bg = jnp.zeros((1, 4 * Hp), jnp.float32)
    for k in range(4):  # PyTorch gate order: i, f, g, o
        wg = wg.at[:I, k * Hp:k * Hp + H].set(w_ih[k * H:(k + 1) * H, :].T)
        wg = wg.at[Ip:Ip + H, k * Hp:k * Hp + H].set(w_hh[k * H:(k + 1) * H, :].T)
        bg = bg.at[0, k * Hp:k * Hp + H].set(b_gate[k * H:(k + 1) * H])

    # fc acts on cat([x, h_new]); split its weight over the same row layout.
    wfc = jnp.zeros((Ip + Hp, Op), jnp.float32)
    wfc = wfc.at[:I, :O].set(params["w_fc"][:, :I].T)
    wfc = wfc.at[Ip:Ip + H, :O].set(params["w_fc"][:, I:].T)
    bfc = jnp.zeros((1, Op), jnp.float32).at[0, :O].set(params["b_fc"])

    return {"wg": wg, "bg": bg, "wfc": wfc, "bfc": bfc,
            "dims": (I, H, O, Ip, Hp, Op)}


# ---------------------------------------------------------------------------
# Fused-sequence forward: one pallas_call for the whole recurrence.
# ---------------------------------------------------------------------------
def lstm_sequence(x_seq, h0, c0, prepped, *, batch_tile=8):
    """x_seq: (T, B, I); h0, c0: (B, H).

    Returns (outputs (T, B, O), (hT (B, H), cT (B, H))).
    """
    I, H, O, Ip, Hp, Op = prepped["dims"]
    T, B, _ = x_seq.shape
    Bt = batch_tile
    Bp = _round_up(max(B, 1), Bt)

    # Zero-pad activations once for the whole sequence.
    xp = jnp.zeros((T, Bp, Ip), jnp.float32).at[:, :B, :I].set(x_seq)
    h0p = jnp.zeros((Bp, Hp), jnp.float32).at[:B, :H].set(h0)
    c0p = jnp.zeros((Bp, Hp), jnp.float32).at[:B, :H].set(c0)

    kernel = functools.partial(_lstm_seq_kernel, ip=Ip, hp=Hp)

    out_p, h_p, c_p = pl.pallas_call(
        kernel,
        out_shape=(
            jax.ShapeDtypeStruct((T, Bp, Op), jnp.float32),
            jax.ShapeDtypeStruct((Bp, Hp), jnp.float32),
            jax.ShapeDtypeStruct((Bp, Hp), jnp.float32),
        ),
        grid_spec=pltpu.PrefetchScalarGridSpec(
            num_scalar_prefetch=0,
            grid=(Bp // Bt, T),  # batch tiles (parallel) x time (serial)
            in_specs=[
                pl.BlockSpec((1, Bt, Ip), lambda b, t: (t, b, 0)),     # x_t
                pl.BlockSpec((Bt, Hp), lambda b, t: (b, 0)),           # h0
                pl.BlockSpec((Bt, Hp), lambda b, t: (b, 0)),           # c0
                pl.BlockSpec((Ip + Hp, 4 * Hp), lambda b, t: (0, 0)),  # Wg (resident)
                pl.BlockSpec((1, 4 * Hp), lambda b, t: (0, 0)),        # bg
                pl.BlockSpec((Ip + Hp, Op), lambda b, t: (0, 0)),      # Wfc (resident)
                pl.BlockSpec((1, Op), lambda b, t: (0, 0)),            # bfc
            ],
            out_specs=(
                pl.BlockSpec((1, Bt, Op), lambda b, t: (t, b, 0)),     # outputs
                pl.BlockSpec((Bt, Hp), lambda b, t: (b, 0)),           # h carry
                pl.BlockSpec((Bt, Hp), lambda b, t: (b, 0)),           # c carry
            ),
            scratch_shapes=[pltpu.VMEM((Bt, Ip + Hp), jnp.float32)],   # [x, h]
        ),
        compiler_params=pltpu.CompilerParams(
            dimension_semantics=("parallel", "arbitrary")),
    )(xp, h0p, c0p, prepped["wg"], prepped["bg"], prepped["wfc"], prepped["bfc"])

    return out_p[:, :B, :O], (h_p[:B, :H], c_p[:B, :H])


def lstm_forward(x, hidden, prepped):
    """Single-step API matching the module's forward(x, (h, c))."""
    h, c = hidden
    out, (h1, c1) = lstm_sequence(x[None], h, c, prepped)
    return out[0], (h1, c1)


def init_hidden(key, batch_size, hidden_size):
    """Matches Models.py initHidden(): randn h and c."""
    kh, kc = jax.random.split(key)
    return (jax.random.normal(kh, (batch_size, hidden_size), jnp.float32),
            jax.random.normal(kc, (batch_size, hidden_size), jnp.float32))


# ---------------------------------------------------------------------------
# Pure-JAX reference (same math, outside Pallas).
# ---------------------------------------------------------------------------
def _lstm_ref(x_seq, h0, c0, params):
    H = h0.shape[1]

    def step(carry, x):
        h, c = carry
        gates = (x @ params["w_ih"].T + params["b_ih"]
                 + h @ params["w_hh"].T + params["b_hh"])
        i = jax.nn.sigmoid(gates[:, 0:H])
        f = jax.nn.sigmoid(gates[:, H:2 * H])
        g = jnp.tanh(gates[:, 2 * H:3 * H])
        o = jax.nn.sigmoid(gates[:, 3 * H:4 * H])
        c = f * c + i * g
        h = o * jnp.tanh(c)
        out = jnp.concatenate([x, h], axis=1) @ params["w_fc"].T + params["b_fc"]
        return (h, c), out

    (hT, cT), outs = jax.lax.scan(step, (h0, c0), x_seq)
    return outs, hT, cT


if __name__ == "__main__":
    seq_len, batch_size = 8, 2
    input_size, hidden_size, output_size = 1, 32, 1

    key = jax.random.PRNGKey(0)
    kp, kx, kh = jax.random.split(key, 3)
    params = init_lstm_params(kp, input_size, hidden_size, output_size)
    prepped = prepare_lstm_params(params, input_size, hidden_size, output_size)

    x_seq = jax.random.normal(kx, (seq_len, batch_size, input_size), jnp.float32)
    h0, c0 = init_hidden(kh, batch_size, hidden_size)

    # Fused whole-sequence kernel (one pallas_call for all timesteps).
    outs, (hT, cT) = lstm_sequence(x_seq, h0, c0, prepped)
    jax.block_until_ready((outs, hT, cT))

    ref_outs, ref_h, ref_c = _lstm_ref(x_seq, h0, c0, params)
    assert outs.shape == (seq_len, batch_size, output_size)
    assert hT.shape == (batch_size, hidden_size)
    assert cT.shape == (batch_size, hidden_size)
    assert jnp.allclose(outs, ref_outs, atol=1e-4), "output mismatch"
    assert jnp.allclose(hT, ref_h, atol=1e-4), "hidden mismatch"
    assert jnp.allclose(cT, ref_c, atol=1e-4), "cell mismatch"

    # Single-step API (module forward(x, (h, c))) uses the same kernel with T=1.
    out1, (h1, c1) = lstm_forward(x_seq[0], (h0, c0), prepped)
    jax.block_until_ready((out1, h1, c1))
    assert jnp.allclose(out1, ref_outs[0], atol=1e-4), "single-step mismatch"

    print("KERNEL_OK")
</pallas_src>

<mosaic_0001>
module attributes {stable_mosaic.version = 11 : i64} {
  func.func @_lstm_seq_kernel(%arg0: i32, %arg1: i32, %arg2: memref<1x8x128xf32, #tpu.memory_space<vmem>>, %arg3: memref<8x128xf32, #tpu.memory_space<vmem>>, %arg4: memref<8x128xf32, #tpu.memory_space<vmem>>, %arg5: memref<256x512xf32, #tpu.memory_space<vmem>>, %arg6: memref<1x512xf32, #tpu.memory_space<vmem>>, %arg7: memref<256x128xf32, #tpu.memory_space<vmem>>, %arg8: memref<1x128xf32, #tpu.memory_space<vmem>>, %arg9: memref<1x8x128xf32, #tpu.memory_space<vmem>>, %arg10: memref<8x128xf32, #tpu.memory_space<vmem>>, %arg11: memref<8x128xf32, #tpu.memory_space<vmem>>, %arg12: memref<8x256xf32, #tpu.memory_space<vmem>>) attributes {dimension_semantics = [#tpu.dimension_semantics<parallel>, #tpu.dimension_semantics<arbitrary>], iteration_bounds = array<i64: 1, 8>, scalar_prefetch = 0 : i64, scratch_operands = 1 : i64, tpu.core_type = #tpu.core_type<tc>, window_params = [{transform_indices = @transform_0, window_bounds = array<i64: 1, 8, 128>}, {transform_indices = @transform_1, window_bounds = array<i64: 8, 128>}, {transform_indices = @transform_2, window_bounds = array<i64: 8, 128>}, {pipeline_mode = #tpu.pipeline_mode<synchronous>, transform_indices = @transform_3, window_bounds = array<i64: 256, 512>}, {pipeline_mode = #tpu.pipeline_mode<synchronous>, transform_indices = @transform_4, window_bounds = array<i64: 1, 512>}, {pipeline_mode = #tpu.pipeline_mode<synchronous>, transform_indices = @transform_5, window_bounds = array<i64: 256, 128>}, {pipeline_mode = #tpu.pipeline_mode<synchronous>, transform_indices = @transform_6, window_bounds = array<i64: 1, 128>}, {transform_indices = @transform_7, window_bounds = array<i64: 1, 8, 128>}, {transform_indices = @transform_8, window_bounds = array<i64: 8, 128>}, {transform_indices = @transform_9, window_bounds = array<i64: 8, 128>}]} {
    %c0_i32 = arith.constant 0 : i32
    %0 = arith.cmpi eq, %arg1, %c0_i32 : i32
    %1 = arith.extui %0 : i1 to i32
    %c0_i32_0 = arith.constant 0 : i32
    %2 = arith.cmpi ne, %1, %c0_i32_0 : i32
    scf.if %2 {
      %c0_35 = arith.constant 0 : index
      %c0_36 = arith.constant 0 : index
      %52 = vector.load %arg3[%c0_35, %c0_36] : memref<8x128xf32, #tpu.memory_space<vmem>>, vector<8x128xf32>
      %c0_37 = arith.constant 0 : index
      %c0_38 = arith.constant 0 : index
      %53 = vector.load %arg10[%c0_37, %c0_38] : memref<8x128xf32, #tpu.memory_space<vmem>>, vector<8x128xf32>
      tpu.vector_store %arg10[%c0_37, %c0_38], %52 {strides = array<i32>} : memref<8x128xf32, #tpu.memory_space<vmem>>, vector<8x128xf32>,
      %c0_39 = arith.constant 0 : index
      %c0_40 = arith.constant 0 : index
      %54 = vector.load %arg4[%c0_39, %c0_40] : memref<8x128xf32, #tpu.memory_space<vmem>>, vector<8x128xf32>
      %c0_41 = arith.constant 0 : index
      %c0_42 = arith.constant 0 : index
      %55 = vector.load %arg11[%c0_41, %c0_42] : memref<8x128xf32, #tpu.memory_space<vmem>>, vector<8x128xf32>
      tpu.vector_store %arg11[%c0_41, %c0_42], %54 {strides = array<i32>} : memref<8x128xf32, #tpu.memory_space<vmem>>, vector<8x128xf32>,
    } else {
    }
    %c0 = arith.constant 0 : index
    %c0_1 = arith.constant 0 : index
    %c0_2 = arith.constant 0 : index
    %3 = vector.load %arg2[%c0, %c0_1, %c0_2] : memref<1x8x128xf32, #tpu.memory_space<vmem>>, vector<1x8x128xf32>
    %4 = vector.shape_cast %3 : vector<1x8x128xf32> to vector<8x128xf32>
    %c0_3 = arith.constant 0 : index
    %c0_4 = arith.constant 0 : index
    %5 = vector.load %arg12[%c0_3, %c0_4] : memref<8x256xf32, #tpu.memory_space<vmem>>, vector<8x128xf32>
    tpu.vector_store %arg12[%c0_3, %c0_4], %4 {strides = array<i32>} : memref<8x256xf32, #tpu.memory_space<vmem>>, vector<8x128xf32>,
    %c0_5 = arith.constant 0 : index
    %c0_6 = arith.constant 0 : index
    %6 = vector.load %arg10[%c0_5, %c0_6] : memref<8x128xf32, #tpu.memory_space<vmem>>, vector<8x128xf32>
    %c0_7 = arith.constant 0 : index
    %c128 = arith.constant 128 : index
    %7 = vector.load %arg12[%c0_7, %c128] : memref<8x256xf32, #tpu.memory_space<vmem>>, vector<8x128xf32>
    tpu.vector_store %arg12[%c0_7, %c128], %6 {strides = array<i32>} : memref<8x256xf32, #tpu.memory_space<vmem>>, vector<8x128xf32>,
    %c0_8 = arith.constant 0 : index
    %c0_9 = arith.constant 0 : index
    %8 = vector.load %arg12[%c0_8, %c0_9] : memref<8x256xf32, #tpu.memory_space<vmem>>, vector<8x256xf32>
    %c0_10 = arith.constant 0 : index
    %c0_11 = arith.constant 0 : index
    %9 = vector.load %arg5[%c0_10, %c0_11] : memref<256x512xf32, #tpu.memory_space<vmem>>, vector<256x512xf32>
    %cst = arith.constant dense<0.000000e+00> : vector<8x512xf32>
    %10 = tpu.matmul %8, %9, %cst {dimension_numbers = #tpu.dot_dimension_numbers<[1], [0], [0], [1], [0, 0, 1, 1], [], []>} : vector<8x256xf32>, vector<256x512xf32>, vector<8x512xf32> -> vector<8x512xf32>
    %c0_12 = arith.constant 0 : index
    %c0_13 = arith.constant 0 : index
    %11 = vector.load %arg6[%c0_12, %c0_13] : memref<1x512xf32, #tpu.memory_space<vmem>>, vector<1x512xf32>
    %12 = vector.broadcast %11 : vector<1x512xf32> to vector<8x512xf32>
    %13 = arith.addf %10, %12 : vector<8x512xf32>
    %14 = vector.extract_strided_slice %13 {offsets = [0, 0], sizes = [8, 128], strides = [1, 1]} : vector<8x512xf32> to vector<8x128xf32>
    %15 = arith.negf %14 : vector<8x128xf32>
    %16 = math.exp %15 : vector<8x128xf32>
    %cst_14 = arith.constant 1.000000e+00 : f32
    %17 = vector.broadcast %cst_14 : f32 to vector<8x128xf32>
    %18 = arith.addf %17, %16 : vector<8x128xf32>
    %19 = arith.divf %17, %18 : vector<8x128xf32>
    %20 = vector.extract_strided_slice %13 {offsets = [0, 128], sizes = [8, 128], strides = [1, 1]} : vector<8x512xf32> to vector<8x128xf32>
    %21 = arith.negf %20 : vector<8x128xf32>
    %22 = math.exp %21 : vector<8x128xf32>
    %cst_15 = arith.constant 1.000000e+00 : f32
    %23 = vector.broadcast %cst_15 : f32 to vector<8x128xf32>
    %24 = arith.addf %23, %22 : vector<8x128xf32>
    %25 = arith.divf %23, %24 : vector<8x128xf32>
    %26 = vector.extract_strided_slice %13 {offsets = [0, 256], sizes = [8, 128], strides = [1, 1]} : vector<8x512xf32> to vector<8x128xf32>
    %27 = math.tanh %26 : vector<8x128xf32>
    %28 = vector.extract_strided_slice %13 {offsets = [0, 384], sizes = [8, 128], strides = [1, 1]} : vector<8x512xf32> to vector<8x128xf32>
    %29 = arith.negf %28 : vector<8x128xf32>
    %30 = math.exp %29 : vector<8x128xf32>
    %cst_16 = arith.constant 1.000000e+00 : f32
    %31 = vector.broadcast %cst_16 : f32 to vector<8x128xf32>
    %32 = arith.addf %31, %30 : vector<8x128xf32>
    %33 = arith.divf %31, %32 : vector<8x128xf32>
    %c0_17 = arith.constant 0 : index
    %c0_18 = arith.constant 0 : index
    %34 = vector.load %arg11[%c0_17, %c0_18] : memref<8x128xf32, #tpu.memory_space<vmem>>, vector<8x128xf32>
    %35 = arith.mulf %25, %34 : vector<8x128xf32>
    %36 = arith.mulf %19, %27 : vector<8x128xf32>
    %37 = arith.addf %35, %36 : vector<8x128xf32>
    %38 = math.tanh %37 : vector<8x128xf32>
    %39 = arith.mulf %33, %38 : vector<8x128xf32>
    %c0_19 = arith.constant 0 : index
    %c0_20 = arith.constant 0 : index
    %40 = vector.load %arg11[%c0_19, %c0_20] : memref<8x128xf32, #tpu.memory_space<vmem>>, vector<8x128xf32>
    tpu.vector_store %arg11[%c0_19, %c0_20], %37 {strides = array<i32>} : memref<8x128xf32, #tpu.memory_space<vmem>>, vector<8x128xf32>,
    %c0_21 = arith.constant 0 : index
    %c0_22 = arith.constant 0 : index
    %41 = vector.load %arg10[%c0_21, %c0_22] : memref<8x128xf32, #tpu.memory_space<vmem>>, vector<8x128xf32>
    tpu.vector_store %arg10[%c0_21, %c0_22], %39 {strides = array<i32>} : memref<8x128xf32, #tpu.memory_space<vmem>>, vector<8x128xf32>,
    %c0_23 = arith.constant 0 : index
    %c128_24 = arith.constant 128 : index
    %42 = vector.load %arg12[%c0_23, %c128_24] : memref<8x256xf32, #tpu.memory_space<vmem>>, vector<8x128xf32>
    tpu.vector_store %arg12[%c0_23, %c128_24], %39 {strides = array<i32>} : memref<8x256xf32, #tpu.memory_space<vmem>>, vector<8x128xf32>,
    %c0_25 = arith.constant 0 : index
    %c0_26 = arith.constant 0 : index
    %43 = vector.load %arg12[%c0_25, %c0_26] : memref<8x256xf32, #tpu.memory_space<vmem>>, vector<8x256xf32>
    %c0_27 = arith.constant 0 : index
    %c0_28 = arith.constant 0 : index
    %44 = vector.load %arg7[%c0_27, %c0_28] : memref<256x128xf32, #tpu.memory_space<vmem>>, vector<256x128xf32>
    %cst_29 = arith.constant dense<0.000000e+00> : vector<8x128xf32>
    %45 = tpu.matmul %43, %44, %cst_29 {dimension_numbers = #tpu.dot_dimension_numbers<[1], [0], [0], [1], [0, 0, 1, 1], [], []>} : vector<8x256xf32>, vector<256x128xf32>, vector<8x128xf32> -> vector<8x128xf32>
    %c0_30 = arith.constant 0 : index
    %c0_31 = arith.constant 0 : index
    %46 = vector.load %arg8[%c0_30, %c0_31] : memref<1x128xf32, #tpu.memory_space<vmem>>, vector<1x128xf32>
    %47 = vector.broadcast %46 : vector<1x128xf32> to vector<8x128xf32>
    %48 = arith.addf %45, %47 : vector<8x128xf32>
    %c0_32 = arith.constant 0 : index
    %c0_33 = arith.constant 0 : index
    %c0_34 = arith.constant 0 : index
    %49 = vector.load %arg9[%c0_32, %c0_33, %c0_34] : memref<1x8x128xf32, #tpu.memory_space<vmem>>, vector<1x8x128xf32>
    %50 = vector.shape_cast %49 : vector<1x8x128xf32> to vector<8x128xf32>
    %51 = vector.shape_cast %48 : vector<8x128xf32> to vector<1x8x128xf32>
    tpu.vector_store %arg9[%c0_32, %c0_33, %c0_34], %51 {strides = array<i32>} : memref<1x8x128xf32, #tpu.memory_space<vmem>>, vector<1x8x128xf32>,
    return
  }
  func.func @transform_0(%arg0: i32, %arg1: i32) -> (i32, i32, i32) {
    %c0_i32 = arith.constant 0 : i32
    %c0_i32_0 = arith.constant 0 : i32
    return %arg1, %arg0, %c0_i32 : i32, i32, i32
  }
  func.func @transform_1(%arg0: i32, %arg1: i32) -> (i32, i32) {
    %c0_i32 = arith.constant 0 : i32
    %c0_i32_0 = arith.constant 0 : i32
    return %arg0, %c0_i32 : i32, i32
  }
  func.func @transform_2(%arg0: i32, %arg1: i32) -> (i32, i32) {
    %c0_i32 = arith.constant 0 : i32
    %c0_i32_0 = arith.constant 0 : i32
    return %arg0, %c0_i32 : i32, i32
  }
  func.func @transform_3(%arg0: i32, %arg1: i32) -> (i32, i32) {
    %c0_i32 = arith.constant 0 : i32
    %c0_i32_0 = arith.constant 0 : i32
    %c0_i32_1 = arith.constant 0 : i32
    return %c0_i32, %c0_i32_0 : i32, i32
  }
  func.func @transform_4(%arg0: i32, %arg1: i32) -> (i32, i32) {
    %c0_i32 = arith.constant 0 : i32
    %c0_i32_0 = arith.constant 0 : i32
    %c0_i32_1 = arith.constant 0 : i32
    return %c0_i32, %c0_i32_0 : i32, i32
  }
  func.func @transform_5(%arg0: i32, %arg1: i32) -> (i32, i32) {
    %c0_i32 = arith.constant 0 : i32
    %c0_i32_0 = arith.constant 0 : i32
    %c0_i32_1 = arith.constant 0 : i32
    return %c0_i32, %c0_i32_0 : i32, i32
  }
  func.func @transform_6(%arg0: i32, %arg1: i32) -> (i32, i32) {
    %c0_i32 = arith.constant 0 : i32
    %c0_i32_0 = arith.constant 0 : i32
    %c0_i32_1 = arith.constant 0 : i32
    return %c0_i32, %c0_i32_0 : i32, i32
  }
  func.func @transform_7(%arg0: i32, %arg1: i32) -> (i32, i32, i32) {
    %c0_i32 = arith.constant 0 : i32
    %c0_i32_0 = arith.constant 0 : i32
    return %arg1, %arg0, %c0_i32 : i32, i32, i32
  }
  func.func @transform_8(%arg0: i32, %arg1: i32) -> (i32, i32) {
    %c0_i32 = arith.constant 0 : i32
    %c0_i32_0 = arith.constant 0 : i32
    return %arg0, %c0_i32 : i32, i32
  }
  func.func @transform_9(%arg0: i32, %arg1: i32) -> (i32, i32) {
    %c0_i32 = arith.constant 0 : i32
    %c0_i32_0 = arith.constant 0 : i32
    return %arg0, %c0_i32 : i32, i32
  }
}

</mosaic_0001>

<llo_original>
// kernel: tpu_custom_call.1
$region0: #{tpu_custom_call.1}
  #allocation0 [shape = 'u32[]', space=smem, size = 0x4, offset = 0x4, fixed_abs, tag = 'smem constant byte address 0x4 - core index']
  #allocation1 [shape = 'u32[144,128]{1,0:T(1,128)}', space=vmem, size = 0x12000, scoped, tag = 'internal scratch']
  #allocation2 [shape = 'f32[8,256]{1,0:T(8,128)}', space=vmem, size = 0x2000, scoped, tag = 'scratch operand']
  %s0 = inlined_call_operand.hbm [shape: f32[8,8,128], index: 0, kind: input, shape index: {}]
  %s1 = inlined_call_operand.hbm [shape: f32[8,128], index: 1, kind: input, shape index: {}]
  %s2 = inlined_call_operand.hbm [shape: f32[8,128], index: 2, kind: input, shape index: {}]
  %s3 = inlined_call_operand.hbm [shape: f32[256,512], index: 3, kind: input, shape index: {}]
  %s4 = inlined_call_operand.vmem [shape: f32[1,512], index: 4, kind: input, shape index: {}]
  %s5 = inlined_call_operand.hbm [shape: f32[256,128], index: 5, kind: input, shape index: {}]
  %s6 = inlined_call_operand.vmem [shape: f32[1,128], index: 6, kind: input, shape index: {}]
  %s7 = inlined_call_operand.hbm [shape: f32[8,8,128], index: 7, kind: output, shape index: {0}]
  %s8 = inlined_call_operand.hbm [shape: f32[8,128], index: 8, kind: output, shape index: {1}]
  %s9 = inlined_call_operand.hbm [shape: f32[8,128], index: 9, kind: output, shape index: {2}]
  %10 = xla_tuple %s7, %s8, %s9
  %s11 = sld [smem:[#allocation0]]
  $region101: #{tpu_custom_call.1} parent=0
    _
  %s13 = ssub.s32 1, %s11
  %s14 = scalar_select 0, %s13, %s11
  $region1: #{tpu_custom_call.1} parent=0
    #allocation3 [shape = 'u8[8192]{0}', space=vmem, size = 0x2000, scoped, tag = 'input window, operand 0']
    #allocation4 [shape = 's32[2]{0}', space=sflag, size = 0x8, scoped, tag = 'scoped memory for tpu_custom_call.1']
    #allocation5 [shape = 's32[2]{0}', space=sflag, size = 0x8, scoped, tag = 'scoped memory for tpu_custom_call.1']
    #allocation6 [shape = 'u8[4096]{0}', space=vmem, size = 0x1000, scoped, tag = 'input window, operand 1, single buffered']
    #allocation7 [shape = 's32[1]{0}', space=sflag, size = 0x4, scoped, tag = 'scoped memory for tpu_custom_call.1']
    #allocation8 [shape = 'u8[4096]{0}', space=vmem, size = 0x1000, scoped, tag = 'input window, operand 2, single buffered']
    #allocation9 [shape = 'u8[524288]{0}', space=vmem, size = 0x80000, scoped, tag = 'input window, operand 3, single buffered']
    #allocation10 [shape = 's32[1]{0}', space=sflag, size = 0x4, scoped, tag = 'scoped memory for tpu_custom_call.1']
    #allocation11 [shape = 'u8[131072]{0}', space=vmem, size = 0x20000, scoped, tag = 'input window, operand 5, single buffered']
    #allocation12 [shape = 'u8[8192]{0}', space=vmem, size = 0x2000, scoped, tag = 'output window, operand 0']
    #allocation13 [shape = 'u8[4096]{0}', space=vmem, size = 0x1000, scoped, tag = 'output window, operand 1, single buffered']
    #allocation14 [shape = 's32[1]{0}', space=sflag, size = 0x4, scoped, tag = 'scoped memory for tpu_custom_call.1']
    #allocation15 [shape = 'u8[4096]{0}', space=vmem, size = 0x1000, scoped, tag = 'output window, operand 2, single buffered']
    %15 = vsyncpa [#allocation4], 0
    %s16 = scalar_lea.sflag [#allocation4], 1
    %17 = vsyncpa %s16, 0
    %18 = vsyncpa [#allocation7], 0
    %19 = vsyncpa [#allocation10], 0
    %20 = vsyncpa [#allocation5], 0
    %s21 = scalar_lea.sflag [#allocation5], 1
    %22 = vsyncpa %s21, 0
    %23 = vsyncpa [#allocation14], 0
    loop: start=0, step=1, limit=10
    $region2: #{tpu_custom_call.1} parent=1 // loop_pre_header
      _
    $region3: #{tpu_custom_call.1} parent=1 // loop_header
      %s25 = sphi 0, %s29
      %p26 = scmp.ge.s32.totalorder %s25, 10
      %s32 = sphi 0, %s44
      %s33 = sphi 0, %s40
      %s34 = sphi 0, %s32
      %s35 = sphi 0, %s33
      %s36 = sphi 0, %s34
      %s37 = sphi 0, %s35
      %s49 = sphi 0, %s51
      %s52 = sphi 0, %s49
      %s53 = sphi 0, %s52
      %s69 = sphi 0, %s53
      %s75 = sphi 0, %s77
      %s78 = sphi 0, %s75
      %s79 = sphi 0, %s78
      %s95 = sphi 0, %s79
      %s101 = sphi 0, %s103
      %s104 = sphi 0, %s101
      %s105 = sphi 0, %s104
      %s121 = sphi 0, %s105
      %s125 = sphi 0, %s125
      %s127 = sphi 0, %s125
      %s128 = sphi 0, %s127
      %s142 = sphi 0, %s128
      %s146 = sphi 0, %s146
      %s148 = sphi 0, %s146
      %s149 = sphi 0, %s148
      %s163 = sphi 0, %s149
      %s167 = sphi 0, %s167
      %s169 = sphi 0, %s167
      %s170 = sphi 0, %s169
      %s184 = sphi 0, %s170
      %s188 = sphi 0, %s188
      %s190 = sphi 0, %s188
      %s191 = sphi 0, %s190
      %s205 = sphi 0, %s191
      %s213 = sphi 0, %s215
      %s216 = sphi 0, %s213
      %s217 = sphi 0, %s216
      %s233 = sphi 0, %s217
      %s239 = sphi 0, %s241
      %s242 = sphi 0, %s239
      %s243 = sphi 0, %s242
      %s259 = sphi 0, %s243
      %s265 = sphi 0, %s267
      %s268 = sphi 0, %s265
      %s269 = sphi 0, %s268
      %s285 = sphi 0, %s269
    $region4: #{tpu_custom_call.1} parent=1 // loop_header_branch
      %28 = sbr.rel (%p26) target = $region8
    $region5: #{tpu_custom_call.1} parent=1 // loop_body
      %s30 = ssub.s32 %s25, 1
      %s31 = ssub.s32 %s25, 2
      %s38 = sadd.s32 1, %s33
      %p39 = scmp.ge.s32.totalorder %s38, 8
      %s40 = scalar_select %p39, 0, %s38
      %s41 = sadd.s32 1, %s32
      %s42 = scalar_select %p39, %s41, %s32
      %p43 = scmp.ge.s32.totalorder %s42, 1
      %s44 = scalar_select %p43, 0, %s42
      %s45 = ssub.s32 %s33, %s40
      %s46 = ssub.s32 %s32, %s44
      %s47 = sor.u32 %s45, %s46
      %p48 = scmp.eq.s32.totalorder %s47, 0
      %s50 = sadd.s32 %s49, 1
      %s51 = scalar_select %p48, %s49, %s50
      %p54 = pneg %p48
      %p55 = scmp.eq.s32.totalorder %s25, 7
      %p56 = por %p54, %p55
      %p57 = scmp.ne.s32.totalorder %s49, %s52
      %p58 = scmp.eq.s32.totalorder %s25, 0
      %p59 = por %p57, %p58
      %p60 = scmp.ne.s32.totalorder %s49, %s52
      %p61 = scmp.eq.s32.totalorder %s30, 7
      %p62 = por %p60, %p61
      %p63 = scmp.ne.s32.totalorder %s52, %s53
      %p64 = scmp.eq.s32.totalorder %s30, 0
      %p65 = por %p63, %p64
      %p66 = scmp.ne.s32.totalorder %s52, %s53
      %p67 = scmp.eq.s32.totalorder %s31, 7
      %p68 = por %p66, %p67
      %p70 = scmp.ne.s32.totalorder %s53, %s69
      %p71 = scmp.eq.s32.totalorder %s31, 0
      %p72 = por %p70, %p71
      %s73 = ssub.s32 %s32, %s44
      %p74 = scmp.eq.s32.totalorder %s73, 0
      %s76 = sadd.s32 %s75, 1
      %s77 = scalar_select %p74, %s75, %s76
      %p80 = pneg %p74
      %p81 = scmp.eq.s32.totalorder %s25, 7
      %p82 = por %p80, %p81
      %p83 = scmp.ne.s32.totalorder %s75, %s78
      %p84 = scmp.eq.s32.totalorder %s25, 0
      %p85 = por %p83, %p84
      %p86 = scmp.ne.s32.totalorder %s75, %s78
      %p87 = scmp.eq.s32.totalorder %s30, 7
      %p88 = por %p86, %p87
      %p89 = scmp.ne.s32.totalorder %s78, %s79
      %p90 = scmp.eq.s32.totalorder %s30, 0
      %p91 = por %p89, %p90
      %p92 = scmp.ne.s32.totalorder %s78, %s79
      %p93 = scmp.eq.s32.totalorder %s31, 7
      %p94 = por %p92, %p93
      %p96 = scmp.ne.s32.totalorder %s79, %s95
      %p97 = scmp.eq.s32.totalorder %s31, 0
      %p98 = por %p96, %p97
      %s99 = ssub.s32 %s32, %s44
      %p100 = scmp.eq.s32.totalorder %s99, 0
      %s102 = sadd.s32 %s101, 1
      %s103 = scalar_select %p100, %s101, %s102
      %p106 = pneg %p100
      %p107 = scmp.eq.s32.totalorder %s25, 7
      %p108 = por %p106, %p107
      %p109 = scmp.ne.s32.totalorder %s101, %s104
      %p110 = scmp.eq.s32.totalorder %s25, 0
      %p111 = por %p109, %p110
      %p112 = scmp.ne.s32.totalorder %s101, %s104
      %p113 = scmp.eq.s32.totalorder %s30, 7
      %p114 = por %p112, %p113
      %p115 = scmp.ne.s32.totalorder %s104, %s105
      %p116 = scmp.eq.s32.totalorder %s30, 0
      %p117 = por %p115, %p116
      %p118 = scmp.ne.s32.totalorder %s104, %s105
      %p119 = scmp.eq.s32.totalorder %s31, 7
      %p120 = por %p118, %p119
      %p122 = scmp.ne.s32.totalorder %s105, %s121
      %p123 = scmp.eq.s32.totalorder %s31, 0
      %p124 = por %p122, %p123
      %s126 = sadd.s32 %s125, 1
      %p129 = scmp.eq.s32.totalorder %s25, 7
      %p130 = scmp.ne.s32.totalorder %s125, %s127
      %p131 = scmp.eq.s32.totalorder %s25, 0
      %p132 = por %p130, %p131
      %p133 = scmp.ne.s32.totalorder %s125, %s127
      %p134 = scmp.eq.s32.totalorder %s30, 7
      %p135 = por %p133, %p134
      %p136 = scmp.ne.s32.totalorder %s127, %s128
      %p137 = scmp.eq.s32.totalorder %s30, 0
      %p138 = por %p136, %p137
      %p139 = scmp.ne.s32.totalorder %s127, %s128
      %p140 = scmp.eq.s32.totalorder %s31, 7
      %p141 = por %p139, %p140
      %p143 = scmp.ne.s32.totalorder %s128, %s142
      %p144 = scmp.eq.s32.totalorder %s31, 0
      %p145 = por %p143, %p144
      %s147 = sadd.s32 %s146, 1
      %p150 = scmp.eq.s32.totalorder %s25, 7
      %p151 = scmp.ne.s32.totalorder %s146, %s148
      %p152 = scmp.eq.s32.totalorder %s25, 0
      %p153 = por %p151, %p152
      %p154 = scmp.ne.s32.totalorder %s146, %s148
      %p155 = scmp.eq.s32.totalorder %s30, 7
      %p156 = por %p154, %p155
      %p157 = scmp.ne.s32.totalorder %s148, %s149
      %p158 = scmp.eq.s32.totalorder %s30, 0
      %p159 = por %p157, %p158
      %p160 = scmp.ne.s32.totalorder %s148, %s149
      %p161 = scmp.eq.s32.totalorder %s31, 7
      %p162 = por %p160, %p161
      %p164 = scmp.ne.s32.totalorder %s149, %s163
      %p165 = scmp.eq.s32.totalorder %s31, 0
      %p166 = por %p164, %p165
      %s168 = sadd.s32 %s167, 1
      %p171 = scmp.eq.s32.totalorder %s25, 7
      %p172 = scmp.ne.s32.totalorder %s167, %s169
      %p173 = scmp.eq.s32.totalorder %s25, 0
      %p174 = por %p172, %p173
      %p175 = scmp.ne.s32.totalorder %s167, %s169
      %p176 = scmp.eq.s32.totalorder %s30, 7
      %p177 = por %p175, %p176
      %p178 = scmp.ne.s32.totalorder %s169, %s170
      %p179 = scmp.eq.s32.totalorder %s30, 0
      %p180 = por %p178, %p179
      %p181 = scmp.ne.s32.totalorder %s169, %s170
      %p182 = scmp.eq.s32.totalorder %s31, 7
      %p183 = por %p181, %p182
      %p185 = scmp.ne.s32.totalorder %s170, %s184
      %p186 = scmp.eq.s32.totalorder %s31, 0
      %p187 = por %p185, %p186
      %s189 = sadd.s32 %s188, 1
      %p192 = scmp.eq.s32.totalorder %s25, 7
      %p193 = scmp.ne.s32.totalorder %s188, %s190
      %p194 = scmp.eq.s32.totalorder %s25, 0
      %p195 = por %p193, %p194
      %p196 = scmp.ne.s32.totalorder %s188, %s190
      %p197 = scmp.eq.s32.totalorder %s30, 7
      %p198 = por %p196, %p197
      %p199 = scmp.ne.s32.totalorder %s190, %s191
      %p200 = scmp.eq.s32.totalorder %s30, 0
      %p201 = por %p199, %p200
      %p202 = scmp.ne.s32.totalorder %s190, %s191
      %p203 = scmp.eq.s32.totalorder %s31, 7
      %p204 = por %p202, %p203
      %p206 = scmp.ne.s32.totalorder %s191, %s205
      %p207 = scmp.eq.s32.totalorder %s31, 0
      %p208 = por %p206, %p207
      %s209 = ssub.s32 %s33, %s40
      %s210 = ssub.s32 %s32, %s44
      %s211 = sor.u32 %s209, %s210
      %p212 = scmp.eq.s32.totalorder %s211, 0
      %s214 = sadd.s32 %s213, 1
      %s215 = scalar_select %p212, %s213, %s214
      %p218 = pneg %p212
      %p219 = scmp.eq.s32.totalorder %s25, 7
      %p220 = por %p218, %p219
      %p221 = scmp.ne.s32.totalorder %s213, %s216
      %p222 = scmp.eq.s32.totalorder %s25, 0
      %p223 = por %p221, %p222
      %p224 = scmp.ne.s32.totalorder %s213, %s216
      %p225 = scmp.eq.s32.totalorder %s30, 7
      %p226 = por %p224, %p225
      %p227 = scmp.ne.s32.totalorder %s216, %s217
      %p228 = scmp.eq.s32.totalorder %s30, 0
      %p229 = por %p227, %p228
      %p230 = scmp.ne.s32.totalorder %s216, %s217
      %p231 = scmp.eq.s32.totalorder %s31, 7
      %p232 = por %p230, %p231
      %p234 = scmp.ne.s32.totalorder %s217, %s233
      %p235 = scmp.eq.s32.totalorder %s31, 0
      %p236 = por %p234, %p235
      %s237 = ssub.s32 %s32, %s44
      %p238 = scmp.eq.s32.totalorder %s237, 0
      %s240 = sadd.s32 %s239, 1
      %s241 = scalar_select %p238, %s239, %s240
      %p244 = pneg %p238
      %p245 = scmp.eq.s32.totalorder %s25, 7
      %p246 = por %p244, %p245
      %p247 = scmp.ne.s32.totalorder %s239, %s242
      %p248 = scmp.eq.s32.totalorder %s25, 0
      %p249 = por %p247, %p248
      %p250 = scmp.ne.s32.totalorder %s239, %s242
      %p251 = scmp.eq.s32.totalorder %s30, 7
      %p252 = por %p250, %p251
      %p253 = scmp.ne.s32.totalorder %s242, %s243
      %p254 = scmp.eq.s32.totalorder %s30, 0
      %p255 = por %p253, %p254
      %p256 = scmp.ne.s32.totalorder %s242, %s243
      %p257 = scmp.eq.s32.totalorder %s31, 7
      %p258 = por %p256, %p257
      %p260 = scmp.ne.s32.totalorder %s243, %s259
      %p261 = scmp.eq.s32.totalorder %s31, 0
      %p262 = por %p260, %p261
      %s263 = ssub.s32 %s32, %s44
      %p264 = scmp.eq.s32.totalorder %s263, 0
      %s266 = sadd.s32 %s265, 1
      %s267 = scalar_select %p264, %s265, %s266
      %p270 = pneg %p264
      %p271 = scmp.eq.s32.totalorder %s25, 7
      %p272 = por %p270, %p271
      %p273 = scmp.ne.s32.totalorder %s265, %s268
      %p274 = scmp.eq.s32.totalorder %s25, 0
      %p275 = por %p273, %p274
      %p276 = scmp.ne.s32.totalorder %s265, %s268
      %p277 = scmp.eq.s32.totalorder %s30, 7
      %p278 = por %p276, %p277
      %p279 = scmp.ne.s32.totalorder %s268, %s269
      %p280 = scmp.eq.s32.totalorder %s30, 0
      %p281 = por %p279, %p280
      %p282 = scmp.ne.s32.totalorder %s268, %s269
      %p283 = scmp.eq.s32.totalorder %s31, 7
      %p284 = por %p282, %p283
      %p286 = scmp.ne.s32.totalorder %s269, %s285
      %p287 = scmp.eq.s32.totalorder %s31, 0
      %p288 = por %p286, %p287
      %p289 = scmp.le.s32.totalorder 1, %s25
      %p290 = scmp.lt.s32.totalorder %s25, 9
      %p291 = pnand %p289, %p290
      %p292 = pneg %p291
      // Predicated region
      $region9: #{tpu_custom_call.1} parent=5 // pred_check
        _
      $region10: #{tpu_custom_call.1} parent=5 // pred_check_branch
        %294 = sbr.rel (%p291) target = $region12
      $region11: #{tpu_custom_call.1} parent=5 // pred_region
        %s295 = ssub.s32 %s25, 1
        // Predicated region
        $region13: #{tpu_custom_call.1} parent=11 // pred_check
          %p296 = pneg %p91
        $region14: #{tpu_custom_call.1} parent=11 // pred_check_branch
          %298 = sbr.rel (%p296) target = $region16
        $region15: #{tpu_custom_call.1} parent=11 // pred_region
          %s300 = ssub.s32 128, 128
          %301 = vsyncadd [#allocation7], %s300
          %s302 = smul.addr %s34, 128
          %s303 = scalar_lea.hbm %s1, %s302
          %s305 = sshll.u32 [#allocation6], 4
          %s306 = int_to_ptr.vmem [resolvable:$true] %s305
          %308 = dma.hbm_to_vmem [thread:$0]  %s303, 128, %s306, [#allocation7]
        $region16: #{tpu_custom_call.1} parent=11 // pred_fallthru
          _
        // Predicated region
        $region17: #{tpu_custom_call.1} parent=11 // pred_check
          %p309 = pneg %p117
        $region18: #{tpu_custom_call.1} parent=11 // pred_check_branch
          %311 = sbr.rel (%p309) target = $region20
        $region19: #{tpu_custom_call.1} parent=11 // pred_region
          %s313 = ssub.s32 128, 128
          %314 = vsyncadd [#allocation7], %s313
          %s315 = smul.addr %s34, 128
          %s316 = scalar_lea.hbm %s2, %s315
          %s318 = sshll.u32 [#allocation8], 4
          %s319 = int_to_ptr.vmem [resolvable:$true] %s318
          %321 = dma.hbm_to_vmem [thread:$0]  %s316, 128, %s319, [#allocation7]
        $region20: #{tpu_custom_call.1} parent=11 // pred_fallthru
          _
        // Predicated region
        $region21: #{tpu_custom_call.1} parent=11 // pred_check
          %p322 = pneg %p138
        $region22: #{tpu_custom_call.1} parent=11 // pred_check_branch
          %324 = sbr.rel (%p322) target = $region24
        $region23: #{tpu_custom_call.1} parent=11 // pred_region
          %s326 = ssub.s32 16384, 16384
          %327 = vsyncadd [#allocation10], %s326
          %s328 = sshll.u32 [#allocation9], 4
          %s329 = int_to_ptr.vmem [resolvable:$true] %s328
          %334 = dma.hbm_to_vmem [thread:$0]  %s3, 16384, %s329, [#allocation10], 512, 512, 32
        $region24: #{tpu_custom_call.1} parent=11 // pred_fallthru
          _
        // Predicated region
        $region25: #{tpu_custom_call.1} parent=11 // pred_check
          %p335 = pneg %p159
        $region26: #{tpu_custom_call.1} parent=11 // pred_check_branch
          %337 = sbr.rel (%p335) target = $region28
        $region27: #{tpu_custom_call.1} parent=11 // pred_region
          _
        $region28: #{tpu_custom_call.1} parent=11 // pred_fallthru
          _
        // Predicated region
        $region29: #{tpu_custom_call.1} parent=11 // pred_check
          %p338 = pneg %p180
        $region30: #{tpu_custom_call.1} parent=11 // pred_check_branch
          %340 = sbr.rel (%p338) target = $region32
        $region31: #{tpu_custom_call.1} parent=11 // pred_region
          %s342 = ssub.s32 4096, 4096
          %343 = vsyncadd [#allocation10], %s342
          %s344 = sshll.u32 [#allocation11], 4
          %s345 = int_to_ptr.vmem [resolvable:$true] %s344
          %350 = dma.hbm_to_vmem [thread:$0]  %s5, 4096, %s345, [#allocation10], 128, 128, 8
        $region32: #{tpu_custom_call.1} parent=11 // pred_fallthru
          _
        // Predicated region
        $region33: #{tpu_custom_call.1} parent=11 // pred_check
          %p351 = pneg %p201
        $region34: #{tpu_custom_call.1} parent=11 // pred_check_branch
          %353 = sbr.rel (%p351) target = $region36
        $region35: #{tpu_custom_call.1} parent=11 // pred_region
          _
        $region36: #{tpu_custom_call.1} parent=11 // pred_fallthru
          _
      $region12: #{tpu_custom_call.1} parent=5 // pred_fallthru
        _
      %p354 = scmp.lt.s32.totalorder %s25, 8
      // Predicated region
      $region37: #{tpu_custom_call.1} parent=5 // pred_check
        %p355 = pneg %p354
      $region38: #{tpu_custom_call.1} parent=5 // pred_check_branch
        %357 = sbr.rel (%p355) target = $region40
      $region39: #{tpu_custom_call.1} parent=5 // pred_region
        // Predicated region
        $region41: #{tpu_custom_call.1} parent=39 // pred_check
          %p358 = pneg %p59
        $region42: #{tpu_custom_call.1} parent=39 // pred_check_branch
          %360 = sbr.rel (%p358) target = $region44
        $region43: #{tpu_custom_call.1} parent=39 // pred_region
          %s361 = sand.u32 %s49, 1
          %s362 = scalar_lea.sflag [#allocation4], %s361
          %s363 = sand.u32 %s49, 1
          %s364 = smul.addr %s363, 8
          %s365 = scalar_lea.vmem [#allocation3], %s364
          %s367 = ssub.s32 128, 128
          %368 = vsyncadd %s362, %s367
          %s369 = sadd.s32 %s32, %s33
          %s370 = smul.addr %s369, 128
          %s371 = scalar_lea.hbm %s0, %s370
          %s373 = sshll.u32 %s365, 4
          %s374 = int_to_ptr.vmem [resolvable:$true] %s373
          %376 = dma.hbm_to_vmem [thread:$0]  %s371, 128, %s374, %s362
        $region44: #{tpu_custom_call.1} parent=39 // pred_fallthru
          _
      $region40: #{tpu_custom_call.1} parent=5 // pred_fallthru
        _
      %p377 = scmp.le.s32.totalorder 1, %s25
      %p378 = scmp.lt.s32.totalorder %s25, 9
      %p379 = pnand %p377, %p378
      %p380 = pneg %p379
      // Predicated region
      $region45: #{tpu_custom_call.1} parent=5 // pred_check
        _
      $region46: #{tpu_custom_call.1} parent=5 // pred_check_branch
        %382 = sbr.rel (%p379) target = $region48
      $region47: #{tpu_custom_call.1} parent=5 // pred_region
        %s383 = ssub.s32 %s25, 1
        %s384 = sand.u32 %s52, 1
        %s385 = scalar_lea.sflag [#allocation4], %s384
        %s386 = sand.u32 %s52, 1
        %s387 = smul.addr %s386, 8
        %s388 = scalar_lea.vmem [#allocation3], %s387
        // Predicated region
        $region49: #{tpu_custom_call.1} parent=47 // pred_check
          %p389 = pneg %p65
        $region50: #{tpu_custom_call.1} parent=47 // pred_check_branch
          %391 = sbr.rel (%p389) target = $region52
        $region51: #{tpu_custom_call.1} parent=47 // pred_region
          %392 = dma.done %s385, 128
        $region52: #{tpu_custom_call.1} parent=47 // pred_fallthru
          _
        // Predicated region
        $region53: #{tpu_custom_call.1} parent=47 // pred_check
          %p393 = pneg %p91
        $region54: #{tpu_custom_call.1} parent=47 // pred_check_branch
          %395 = sbr.rel (%p393) target = $region56
        $region55: #{tpu_custom_call.1} parent=47 // pred_region
          %396 = dma.done [#allocation7], 128
        $region56: #{tpu_custom_call.1} parent=47 // pred_fallthru
          _
        // Predicated region
        $region57: #{tpu_custom_call.1} parent=47 // pred_check
          %p397 = pneg %p117
        $region58: #{tpu_custom_call.1} parent=47 // pred_check_branch
          %399 = sbr.rel (%p397) target = $region60
        $region59: #{tpu_custom_call.1} parent=47 // pred_region
          %400 = dma.done [#allocation7], 128
        $region60: #{tpu_custom_call.1} parent=47 // pred_fallthru
          _
        // Predicated region
        $region61: #{tpu_custom_call.1} parent=47 // pred_check
          %p401 = pneg %p138
        $region62: #{tpu_custom_call.1} parent=47 // pred_check_branch
          %403 = sbr.rel (%p401) target = $region64
        $region63: #{tpu_custom_call.1} parent=47 // pred_region
          %404 = dma.done [#allocation10], 16384
        $region64: #{tpu_custom_call.1} parent=47 // pred_fallthru
          _
        // Predicated region
        $region65: #{tpu_custom_call.1} parent=47 // pred_check
          %p405 = pneg %p180
        $region66: #{tpu_custom_call.1} parent=47 // pred_check_branch
          %407 = sbr.rel (%p405) target = $region68
        $region67: #{tpu_custom_call.1} parent=47 // pred_region
          %408 = dma.done [#allocation10], 4096
        $region68: #{tpu_custom_call.1} parent=47 // pred_fallthru
          _
        %s409 = sand.u32 %s52, 1
        %s410 = scalar_lea.sflag [#allocation4], %s409
        %s411 = sand.u32 %s52, 1
        %s412 = smul.addr %s411, 8
        %s413 = scalar_lea.vmem [#allocation3], %s412
        %p414 = pneg %p65
        %p415 = pneg %p62
        %p416 = pneg %p91
        %p417 = pneg %p88
        %p418 = pneg %p117
        %p419 = pneg %p114
        %p420 = pneg %p138
        %p421 = pneg %p135
        %p422 = pneg %p159
        %p423 = pneg %p156
        %p424 = pneg %p180
        %p425 = pneg %p177
        %p426 = pneg %p201
        %p427 = pneg %p198
        %p428 = pneg %p229
        %p429 = pneg %p226
        %s430 = sand.u32 %s216, 1
        %s431 = scalar_lea.sflag [#allocation5], %s430
        %s432 = sand.u32 %s216, 1
        %s433 = smul.addr %s432, 8
        %s434 = scalar_lea.vmem [#allocation12], %s433
        %p435 = pneg %p255
        %p436 = pneg %p252
        %p437 = pneg %p281
        %p438 = pneg %p278
        %p439 = scmp.eq.s32.totalorder %s35, 0
        // Predicated region
        $region69: #{tpu_custom_call.1} parent=47 // pred_check
          %p440 = pneg %p439
        $region70: #{tpu_custom_call.1} parent=47 // pred_check_branch
          %442 = sbr.rel (%p440) target = $region72
        $region71: #{tpu_custom_call.1} parent=47 // pred_region
          %v443 = vld [vmem:[#allocation6] sm:$0xff]
          %444 = vst [vmem:[#allocation13] sm:$0xff] %v443
          %v445 = vld [vmem:[#allocation8] sm:$0xff]
          %446 = vst [vmem:[#allocation15] sm:$0xff] %v445
        $region72: #{tpu_custom_call.1} parent=47 // pred_fallthru
          _
        %v447 = vld [vmem:[%s388] sm:$0xff]
        %448 = vst [vmem:[#allocation2] sm:$0xff] %v447
        %v449 = vld [vmem:[#allocation13] sm:$0xff]
        %450 = vst [vmem:[#allocation2 + $0x8] sm:$0xff] %v449
        %v451 = vld [vmem:[#allocation2] sm:$0xff]
        %v452 = vld [vmem:[#allocation2 + $0x8] sm:$0xff]
        %v453 = vld [vmem:[#allocation9] sm:$0xff]
        %v454 = vld [vmem:[#allocation9 + $0x8] sm:$0xff]
        %v455 = vld [vmem:[#allocation9 + $0x10] sm:$0xff]
        %v456 = vld [vmem:[#allocation9 + $0x18] sm:$0xff]
        %v457 = vld [vmem:[#allocation9 + $0x20] sm:$0xff]
        %v458 = vld [vmem:[#allocation9 + $0x28] sm:$0xff]
        %v459 = vld [vmem:[#allocation9 + $0x30] sm:$0xff]
        %v460 = vld [vmem:[#allocation9 + $0x38] sm:$0xff]
        %v461 = vld [vmem:[#allocation9 + $0x40] sm:$0xff]
        %v462 = vld [vmem:[#allocation9 + $0x48] sm:$0xff]
        %v463 = vld [vmem:[#allocation9 + $0x50] sm:$0xff]
        %v464 = vld [vmem:[#allocation9 + $0x58] sm:$0xff]
        %v465 = vld [vmem:[#allocation9 + $0x60] sm:$0xff]
        %v466 = vld [vmem:[#allocation9 + $0x68] sm:$0xff]
        %v467 = vld [vmem:[#allocation9 + $0x70] sm:$0xff]
        %v468 = vld [vmem:[#allocation9 + $0x78] sm:$0xff]
        %v469 = vld [vmem:[#allocation9 + $0x80] sm:$0xff]
        %v470 = vld [vmem:[#allocation9 + $0x88] sm:$0xff]
        %v471 = vld [vmem:[#allocation9 + $0x90] sm:$0xff]
        %v472 = vld [vmem:[#allocation9 + $0x98] sm:$0xff]
        %v473 = vld [vmem:[#allocation9 + $0xa0] sm:$0xff]
        %v474 = vld [vmem:[#allocation9 + $0xa8] sm:$0xff]
        %v475 = vld [vmem:[#allocation9 + $0xb0] sm:$0xff]
        %v476 = vld [vmem:[#allocation9 + $0xb8] sm:$0xff]
        %v477 = vld [vmem:[#allocation9 + $0xc0] sm:$0xff]
        %v478 = vld [vmem:[#allocation9 + $0xc8] sm:$0xff]
        %v479 = vld [vmem:[#allocation9 + $0xd0] sm:$0xff]
        %v480 = vld [vmem:[#allocation9 + $0xd8] sm:$0xff]
        %v481 = vld [vmem:[#allocation9 + $0xe0] sm:$0xff]
        %v482 = vld [vmem:[#allocation9 + $0xe8] sm:$0xff]
        %v483 = vld [vmem:[#allocation9 + $0xf0] sm:$0xff]
        %v484 = vld [vmem:[#allocation9 + $0xf8] sm:$0xff]
        %v485 = vld [vmem:[#allocation9 + $0x100] sm:$0xff]
        %v486 = vld [vmem:[#allocation9 + $0x108] sm:$0xff]
        %v487 = vld [vmem:[#allocation9 + $0x110] sm:$0xff]
        %v488 = vld [vmem:[#allocation9 + $0x118] sm:$0xff]
        %v489 = vld [vmem:[#allocation9 + $0x120] sm:$0xff]
        %v490 = vld [vmem:[#allocation9 + $0x128] sm:$0xff]
        %v491 = vld [vmem:[#allocation9 + $0x130] sm:$0xff]
        %v492 = vld [vmem:[#allocation9 + $0x138] sm:$0xff]
        %v493 = vld [vmem:[#allocation9 + $0x140] sm:$0xff]
        %v494 = vld [vmem:[#allocation9 + $0x148] sm:$0xff]
        %v495 = vld [vmem:[#allocation9 + $0x150] sm:$0xff]
        %v496 = vld [vmem:[#allocation9 + $0x158] sm:$0xff]
        %v497 = vld [vmem:[#allocation9 + $0x160] sm:$0xff]
        %v498 = vld [vmem:[#allocation9 + $0x168] sm:$0xff]
        %v499 = vld [vmem:[#allocation9 + $0x170] sm:$0xff]
        %v500 = vld [vmem:[#allocation9 + $0x178] sm:$0xff]
        %v501 = vld [vmem:[#allocation9 + $0x180] sm:$0xff]
        %v502 = vld [vmem:[#allocation9 + $0x188] sm:$0xff]
        %v503 = vld [vmem:[#allocation9 + $0x190] sm:$0xff]
        %v504 = vld [vmem:[#allocation9 + $0x198] sm:$0xff]
        %v505 = vld [vmem:[#allocation9 + $0x1a0] sm:$0xff]
        %v506 = vld [vmem:[#allocation9 + $0x1a8] sm:$0xff]
        %v507 = vld [vmem:[#allocation9 + $0x1b0] sm:$0xff]
        %v508 = vld [vmem:[#allocation9 + $0x1b8] sm:$0xff]
        %v509 = vld [vmem:[#allocation9 + $0x1c0] sm:$0xff]
        %v510 = vld [vmem:[#allocation9 + $0x1c8] sm:$0xff]
        %v511 = vld [vmem:[#allocation9 + $0x1d0] sm:$0xff]
        %v512 = vld [vmem:[#allocation9 + $0x1d8] sm:$0xff]
        %v513 = vld [vmem:[#allocation9 + $0x1e0] sm:$0xff]
        %v514 = vld [vmem:[#allocation9 + $0x1e8] sm:$0xff]
        %v515 = vld [vmem:[#allocation9 + $0x1f0] sm:$0xff]
        %v516 = vld [vmem:[#allocation9 + $0x1f8] sm:$0xff]
        %v517 = vld [vmem:[#allocation9 + $0x200] sm:$0xff]
        %v518 = vld [vmem:[#allocation9 + $0x208] sm:$0xff]
        %v519 = vld [vmem:[#allocation9 + $0x210] sm:$0xff]
        %v520 = vld [vmem:[#allocation9 + $0x218] sm:$0xff]
        %v521 = vld [vmem:[#allocation9 + $0x220] sm:$0xff]
        %v522 = vld [vmem:[#allocation9 + $0x228] sm:$0xff]
        %v523 = vld [vmem:[#allocation9 + $0x230] sm:$0xff]
        %v524 = vld [vmem:[#allocation9 + $0x238] sm:$0xff]
        %v525 = vld [vmem:[#allocation9 + $0x240] sm:$0xff]
        %v526 = vld [vmem:[#allocation9 + $0x248] sm:$0xff]
        %v527 = vld [vmem:[#allocation9 + $0x250] sm:$0xff]
        %v528 = vld [vmem:[#allocation9 + $0x258] sm:$0xff]
        %v529 = vld [vmem:[#allocation9 + $0x260] sm:$0xff]
        %v530 = vld [vmem:[#allocation9 + $0x268] sm:$0xff]
        %v531 = vld [vmem:[#allocation9 + $0x270] sm:$0xff]
        %v532 = vld [vmem:[#allocation9 + $0x278] sm:$0xff]
        %v533 = vld [vmem:[#allocation9 + $0x280] sm:$0xff]
        %v534 = vld [vmem:[#allocation9 + $0x288] sm:$0xff]
        %v535 = vld [vmem:[#allocation9 + $0x290] sm:$0xff]
        %v536 = vld [vmem:[#allocation9 + $0x298] sm:$0xff]
        %v537 = vld [vmem:[#allocation9 + $0x2a0] sm:$0xff]
        %v538 = vld [vmem:[#allocation9 + $0x2a8] sm:$0xff]
        %v539 = vld [vmem:[#allocation9 + $0x2b0] sm:$0xff]
        %v540 = vld [vmem:[#allocation9 + $0x2b8] sm:$0xff]
        %v541 = vld [vmem:[#allocation9 + $0x2c0] sm:$0xff]
        %v542 = vld [vmem:[#allocation9 + $0x2c8] sm:$0xff]
        %v543 = vld [vmem:[#allocation9 + $0x2d0] sm:$0xff]
        %v544 = vld [vmem:[#allocation9 + $0x2d8] sm:$0xff]
        %v545 = vld [vmem:[#allocation9 + $0x2e0] sm:$0xff]
        %v546 = vld [vmem:[#allocation9 + $0x2e8] sm:$0xff]
        %v547 = vld [vmem:[#allocation9 + $0x2f0] sm:$0xff]
        %v548 = vld [vmem:[#allocation9 + $0x2f8] sm:$0xff]
        %v549 = vld [vmem:[#allocation9 + $0x300] sm:$0xff]
        %v550 = vld [vmem:[#allocation9 + $0x308] sm:$0xff]
        %v551 = vld [vmem:[#allocation9 + $0x310] sm:$0xff]
        %v552 = vld [vmem:[#allocation9 + $0x318] sm:$0xff]
        %v553 = vld [vmem:[#allocation9 + $0x320] sm:$0xff]
        %v554 = vld [vmem:[#allocation9 + $0x328] sm:$0xff]
        %v555 = vld [vmem:[#allocation9 + $0x330] sm:$0xff]
        %v556 = vld [vmem:[#allocation9 + $0x338] sm:$0xff]
        %v557 = vld [vmem:[#allocation9 + $0x340] sm:$0xff]
        %v558 = vld [vmem:[#allocation9 + $0x348] sm:$0xff]
        %v559 = vld [vmem:[#allocation9 + $0x350] sm:$0xff]
        %v560 = vld [vmem:[#allocation9 + $0x358] sm:$0xff]
        %v561 = vld [vmem:[#allocation9 + $0x360] sm:$0xff]
        %v562 = vld [vmem:[#allocation9 + $0x368] sm:$0xff]
        %v563 = vld [vmem:[#allocation9 + $0x370] sm:$0xff]
        %v564 = vld [vmem:[#allocation9 + $0x378] sm:$0xff]
        %v565 = vld [vmem:[#allocation9 + $0x380] sm:$0xff]
        %v566 = vld [vmem:[#allocation9 + $0x388] sm:$0xff]
        %v567 = vld [vmem:[#allocation9 + $0x390] sm:$0xff]
        %v568 = vld [vmem:[#allocation9 + $0x398] sm:$0xff]
        %v569 = vld [vmem:[#allocation9 + $0x3a0] sm:$0xff]
        %v570 = vld [vmem:[#allocation9 + $0x3a8] sm:$0xff]
        %v571 = vld [vmem:[#allocation9 + $0x3b0] sm:$0xff]
        %v572 = vld [vmem:[#allocation9 + $0x3b8] sm:$0xff]
        %v573 = vld [vmem:[#allocation9 + $0x3c0] sm:$0xff]
        %v574 = vld [vmem:[#allocation9 + $0x3c8] sm:$0xff]
        %v575 = vld [vmem:[#allocation9 + $0x3d0] sm:$0xff]
        %v576 = vld [vmem:[#allocation9 + $0x3d8] sm:$0xff]
        %v577 = vld [vmem:[#allocation9 + $0x3e0] sm:$0xff]
        %v578 = vld [vmem:[#allocation9 + $0x3e8] sm:$0xff]
        %v579 = vld [vmem:[#allocation9 + $0x3f0] sm:$0xff]
        %v580 = vld [vmem:[#allocation9 + $0x3f8] sm:$0xff]
        %v581 = vld [vmem:[%s4] sm:$0xf]
        %v583 = vlaneseq
        %v584 = vshrl.u32 %v583, 7
        %v585 = vsub.s32 0, %v584
        %v586 = vrot.slane %v581, %v585
        %v587 = vlaneseq
        %v588 = vshrl.u32 %v587, 7
        %v589 = vsub.s32 1, %v588
        %v590 = vrot.slane %v581, %v589
        %v591 = vlaneseq
        %v592 = vshrl.u32 %v591, 7
        %v593 = vsub.s32 2, %v592
        %v594 = vrot.slane %v581, %v593
        %v595 = vlaneseq
        %v596 = vshrl.u32 %v595, 7
        %v597 = vsub.s32 3, %v596
        %v598 = vrot.slane %v581, %v597
        %603 = vmatprep.subr.mxu0 %v454
        %604 = vmatpush1.msra.mxu0 %v453
        %605 = vmatprep.subr.mxu0 %v458
        %606 = vmatpush1.msra.mxu0 %v457
        %607 = vmatprep.subr.mxu0 %v462
        %608 = vmatpush1.msra.mxu0 %v461
        %609 = vmatprep.subr.mxu0 %v466
        %610 = vmatpush1.msra.mxu0 %v465
        %611 = vmatprep.subr.mxu0 %v470
        %612 = vmatpush1.msra.mxu0 %v469
        %613 = vmatprep.subr.mxu0 %v474
        %614 = vmatpush1.msra.mxu0 %v473
        %615 = vmatprep.subr.mxu0 %v478
        %616 = vmatpush1.msra.mxu0 %v477
        %617 = vmatprep.subr.mxu0 %v482
        %618 = vmatpush1.msra.mxu0 %v481
        %619 = vmatprep.subr.mxu0 %v486
        %620 = vmatpush1.msra.mxu0 %v485
        %621 = vmatprep.subr.mxu0 %v490
        %622 = vmatpush1.msra.mxu0 %v489
        %623 = vmatprep.subr.mxu0 %v494
        %624 = vmatpush1.msra.mxu0 %v493
        %625 = vmatprep.subr.mxu0 %v498
        %626 = vmatpush1.msra.mxu0 %v497
        %627 = vmatprep.subr.mxu0 %v502
        %628 = vmatpush1.msra.mxu0 %v501
        %629 = vmatprep.subr.mxu0 %v506
        %630 = vmatpush1.msra.mxu0 %v505
        %631 = vmatprep.subr.mxu0 %v510
        %632 = vmatpush1.msra.mxu0 %v509
        %633 = vmatprep.subr.mxu0 %v514
        %634 = vmatpush1.msra.mxu0 %v513
        %635 = vmatprep.subr.mxu0 %v518
        %636 = vmatpush1.msra.mxu0 %v517
        %637 = vmatprep.subr.mxu0 %v522
        %638 = vmatpush1.msra.mxu0 %v521
        %639 = vmatprep.subr.mxu0 %v526
        %640 = vmatpush1.msra.mxu0 %v525
        %641 = vmatprep.subr.mxu0 %v530
        %642 = vmatpush1.msra.mxu0 %v529
        %643 = vmatprep.subr.mxu0 %v534
        %644 = vmatpush1.msra.mxu0 %v533
        %645 = vmatprep.subr.mxu0 %v538
        %646 = vmatpush1.msra.mxu0 %v537
        %647 = vmatprep.subr.mxu0 %v542
        %648 = vmatpush1.msra.mxu0 %v541
        %649 = vmatprep.subr.mxu0 %v546
        %650 = vmatpush1.msra.mxu0 %v545
        %651 = vmatprep.subr.mxu0 %v550
        %652 = vmatpush1.msra.mxu0 %v549
        %653 = vmatprep.subr.mxu0 %v554
        %654 = vmatpush1.msra.mxu0 %v553
        %655 = vmatprep.subr.mxu0 %v558
        %656 = vmatpush1.msra.mxu0 %v557
        %657 = vmatprep.subr.mxu0 %v562
        %658 = vmatpush1.msra.mxu0 %v561
        %659 = vmatprep.subr.mxu0 %v566
        %660 = vmatpush1.msra.mxu0 %v565
        %661 = vmatprep.subr.mxu0 %v570
        %662 = vmatpush1.msra.mxu0 %v569
        %663 = vmatprep.subr.mxu0 %v574
        %664 = vmatpush1.msra.mxu0 %v573
        %665 = vmatprep.subr.mxu0 %v578
        %666 = vmatpush1.msra.mxu0 %v577
        %667 = vmatprep.mubr.f32.mxu0 %v452
        %668 = vmatmul.mubr.f32.gmra.mrb[0].mxu0 %v451
        %v669 = vpop.f32.mrb[0].mxu0
        %v670 = vadd.f32 %v586, %v669
        %v671 = vpop.f32.mrb[0].mxu0
        %v672 = vadd.f32 %v590, %v671
        %673 = vdwg.mxu0
        %674 = vmatprep.subr.mxu0 %v456
        %675 = vmatpush1.msra.mxu0 %v455
        %676 = vmatprep.subr.mxu0 %v460
        %677 = vmatpush1.msra.mxu0 %v459
        %678 = vmatprep.subr.mxu0 %v464
        %679 = vmatpush1.msra.mxu0 %v463
        %680 = vmatprep.subr.mxu0 %v468
        %681 = vmatpush1.msra.mxu0 %v467
        %682 = vmatprep.subr.mxu0 %v472
        %683 = vmatpush1.msra.mxu0 %v471
        %684 = vmatprep.subr.mxu0 %v476
        %685 = vmatpush1.msra.mxu0 %v475
        %686 = vmatprep.subr.mxu0 %v480
        %687 = vmatpush1.msra.mxu0 %v479
        %688 = vmatprep.subr.mxu0 %v484
        %689 = vmatpush1.msra.mxu0 %v483
        %690 = vmatprep.subr.mxu0 %v488
        %691 = vmatpush1.msra.mxu0 %v487
        %692 = vmatprep.subr.mxu0 %v492
        %693 = vmatpush1.msra.mxu0 %v491
        %694 = vmatprep.subr.mxu0 %v496
        %695 = vmatpush1.msra.mxu0 %v495
        %696 = vmatprep.subr.mxu0 %v500
        %697 = vmatpush1.msra.mxu0 %v499
        %698 = vmatprep.subr.mxu0 %v504
        %699 = vmatpush1.msra.mxu0 %v503
        %700 = vmatprep.subr.mxu0 %v508
        %701 = vmatpush1.msra.mxu0 %v507
        %702 = vmatprep.subr.mxu0 %v512
        %703 = vmatpush1.msra.mxu0 %v511
        %704 = vmatprep.subr.mxu0 %v516
        %705 = vmatpush1.msra.mxu0 %v515
        %706 = vmatprep.subr.mxu0 %v520
        %707 = vmatpush1.msra.mxu0 %v519
        %708 = vmatprep.subr.mxu0 %v524
        %709 = vmatpush1.msra.mxu0 %v523
        %710 = vmatprep.subr.mxu0 %v528
        %711 = vmatpush1.msra.mxu0 %v527
        %712 = vmatprep.subr.mxu0 %v532
        %713 = vmatpush1.msra.mxu0 %v531
        %714 = vmatprep.subr.mxu0 %v536
        %715 = vmatpush1.msra.mxu0 %v535
        %716 = vmatprep.subr.mxu0 %v540
        %717 = vmatpush1.msra.mxu0 %v539
        %718 = vmatprep.subr.mxu0 %v544
        %719 = vmatpush1.msra.mxu0 %v543
        %720 = vmatprep.subr.mxu0 %v548
        %721 = vmatpush1.msra.mxu0 %v547
        %722 = vmatprep.subr.mxu0 %v552
        %723 = vmatpush1.msra.mxu0 %v551
        %724 = vmatprep.subr.mxu0 %v556
        %725 = vmatpush1.msra.mxu0 %v555
        %726 = vmatprep.subr.mxu0 %v560
        %727 = vmatpush1.msra.mxu0 %v559
        %728 = vmatprep.subr.mxu0 %v564
        %729 = vmatpush1.msra.mxu0 %v563
        %730 = vmatprep.subr.mxu0 %v568
        %731 = vmatpush1.msra.mxu0 %v567
        %732 = vmatprep.subr.mxu0 %v572
        %733 = vmatpush1.msra.mxu0 %v571
        %734 = vmatprep.subr.mxu0 %v576
        %735 = vmatpush1.msra.mxu0 %v575
        %736 = vmatprep.subr.mxu0 %v580
        %737 = vmatpush1.msra.mxu0 %v579
        %738 = vmatprep.mubr.f32.mxu0 %v452
        %739 = vmatmul.mubr.f32.gmra.mrb[0].mxu0 %v451
        %v740 = vpop.f32.mrb[0].mxu0
        %v741 = vadd.f32 %v594, %v740
        %v742 = vpop.f32.mrb[0].mxu0
        %v743 = vadd.f32 %v598, %v742
        %744 = vdwg.mxu0
        %v745 = vxor.u32 %v670, 2147483648
        %v746 = vmul.f32 %v745, 1.442695
        %v747 = vpow.pop %v746
        %v748 = vadd.f32 %v747, 1.0
        %v749 = vrcp.pop %v748
        %v750 = vmul.f32 1.0, %v749
        %v751 = vxor.u32 %v672, 2147483648
        %v752 = vmul.f32 %v751, 1.442695
        %v753 = vpow.pop %v752
        %v754 = vadd.f32 %v753, 1.0
        %v755 = vrcp.pop %v754
        %v756 = vmul.f32 1.0, %v755
        %v757 = vtanh.pop %v741
        %v758 = vxor.u32 %v743, 2147483648
        %v759 = vmul.f32 %v758, 1.442695
        %v760 = vpow.pop %v759
        %v761 = vadd.f32 %v760, 1.0
        %v762 = vrcp.pop %v761
        %v763 = vmul.f32 1.0, %v762
        %v764 = vld [vmem:[#allocation15] sm:$0xff]
        %v765 = vmul.f32 %v756, %v764
        %v766 = vmul.f32 %v750, %v757
        %v767 = vadd.f32 %v765, %v766
        %v768 = vtanh.pop %v767
        %v769 = vmul.f32 %v763, %v768
        %770 = vst [vmem:[#allocation15] sm:$0xff] %v767
        %771 = vst [vmem:[#allocation13] sm:$0xff] %v769
        %772 = vst [vmem:[#allocation2 + $0x8] sm:$0xff] %v769
        %v773 = vld [vmem:[#allocation2] sm:$0xff]
        %v774 = vld [vmem:[#allocation2 + $0x8] sm:$0xff]
        %v775 = vld [vmem:[#allocation11] sm:$0xff]
        %v776 = vld [vmem:[#allocation11 + $0x8] sm:$0xff]
        %v777 = vld [vmem:[#allocation11 + $0x10] sm:$0xff]
        %v778 = vld [vmem:[#allocation11 + $0x18] sm:$0xff]
        %v779 = vld [vmem:[#allocation11 + $0x20] sm:$0xff]
        %v780 = vld [vmem:[#allocation11 + $0x28] sm:$0xff]
        %v781 = vld [vmem:[#allocation11 + $0x30] sm:$0xff]
        %v782 = vld [vmem:[#allocation11 + $0x38] sm:$0xff]
        %v783 = vld [vmem:[#allocation11 + $0x40] sm:$0xff]
        %v784 = vld [vmem:[#allocation11 + $0x48] sm:$0xff]
        %v785 = vld [vmem:[#allocation11 + $0x50] sm:$0xff]
        %v786 = vld [vmem:[#allocation11 + $0x58] sm:$0xff]
        %v787 = vld [vmem:[#allocation11 + $0x60] sm:$0xff]
        %v788 = vld [vmem:[#allocation11 + $0x68] sm:$0xff]
        %v789 = vld [vmem:[#allocation11 + $0x70] sm:$0xff]
        %v790 = vld [vmem:[#allocation11 + $0x78] sm:$0xff]
        %v791 = vld [vmem:[#allocation11 + $0x80] sm:$0xff]
        %v792 = vld [vmem:[#allocation11 + $0x88] sm:$0xff]
        %v793 = vld [vmem:[#allocation11 + $0x90] sm:$0xff]
        %v794 = vld [vmem:[#allocation11 + $0x98] sm:$0xff]
        %v795 = vld [vmem:[#allocation11 + $0xa0] sm:$0xff]
        %v796 = vld [vmem:[#allocation11 + $0xa8] sm:$0xff]
        %v797 = vld [vmem:[#allocation11 + $0xb0] sm:$0xff]
        %v798 = vld [vmem:[#allocation11 + $0xb8] sm:$0xff]
        %v799 = vld [vmem:[#allocation11 + $0xc0] sm:$0xff]
        %v800 = vld [vmem:[#allocation11 + $0xc8] sm:$0xff]
        %v801 = vld [vmem:[#allocation11 + $0xd0] sm:$0xff]
        %v802 = vld [vmem:[#allocation11 + $0xd8] sm:$0xff]
        %v803 = vld [vmem:[#allocation11 + $0xe0] sm:$0xff]
        %v804 = vld [vmem:[#allocation11 + $0xe8] sm:$0xff]
        %v805 = vld [vmem:[#allocation11 + $0xf0] sm:$0xff]
        %v806 = vld [vmem:[#allocation11 + $0xf8] sm:$0xff]
        %v807 = vld [vmem:[%s6] sm:$0x1]
        %v809 = vlaneseq
        %v810 = vshrl.u32 %v809, 7
        %v811 = vsub.s32 0, %v810
        %v812 = vrot.slane %v807, %v811
        %814 = vmatprep.subr.mxu0 0.0
        %815 = vmatpush1.msra.mxu0 %v775
        %816 = vmatprep.subr.mxu0 0.0
        %817 = vmatpush1.msra.mxu0 %v776
        %818 = vmatprep.subr.mxu0 0.0
        %819 = vmatpush1.msra.mxu0 %v777
        %820 = vmatprep.subr.mxu0 0.0
        %821 = vmatpush1.msra.mxu0 %v778
        %822 = vmatprep.subr.mxu0 0.0
        %823 = vmatpush1.msra.mxu0 %v779
        %824 = vmatprep.subr.mxu0 0.0
        %825 = vmatpush1.msra.mxu0 %v780
        %826 = vmatprep.subr.mxu0 0.0
        %827 = vmatpush1.msra.mxu0 %v781
        %828 = vmatprep.subr.mxu0 0.0
        %829 = vmatpush1.msra.mxu0 %v782
        %830 = vmatprep.subr.mxu0 0.0
        %831 = vmatpush1.msra.mxu0 %v783
        %832 = vmatprep.subr.mxu0 0.0
        %833 = vmatpush1.msra.mxu0 %v784
        %834 = vmatprep.subr.mxu0 0.0
        %835 = vmatpush1.msra.mxu0 %v785
        %836 = vmatprep.subr.mxu0 0.0
        %837 = vmatpush1.msra.mxu0 %v786
        %838 = vmatprep.subr.mxu0 0.0
        %839 = vmatpush1.msra.mxu0 %v787
        %840 = vmatprep.subr.mxu0 0.0
        %841 = vmatpush1.msra.mxu0 %v788
        %842 = vmatprep.subr.mxu0 0.0
        %843 = vmatpush1.msra.mxu0 %v789
        %844 = vmatprep.subr.mxu0 0.0
        %845 = vmatpush1.msra.mxu0 %v790
        %846 = vmatprep.subr.mxu0 0.0
        %847 = vmatpush1.msra.mxu0 %v791
        %848 = vmatprep.subr.mxu0 0.0
        %849 = vmatpush1.msra.mxu0 %v792
        %850 = vmatprep.subr.mxu0 0.0
        %851 = vmatpush1.msra.mxu0 %v793
        %852 = vmatprep.subr.mxu0 0.0
        %853 = vmatpush1.msra.mxu0 %v794
        %854 = vmatprep.subr.mxu0 0.0
        %855 = vmatpush1.msra.mxu0 %v795
        %856 = vmatprep.subr.mxu0 0.0
        %857 = vmatpush1.msra.mxu0 %v796
        %858 = vmatprep.subr.mxu0 0.0
        %859 = vmatpush1.msra.mxu0 %v797
        %860 = vmatprep.subr.mxu0 0.0
        %861 = vmatpush1.msra.mxu0 %v798
        %862 = vmatprep.subr.mxu0 0.0
        %863 = vmatpush1.msra.mxu0 %v799
        %864 = vmatprep.subr.mxu0 0.0
        %865 = vmatpush1.msra.mxu0 %v800
        %866 = vmatprep.subr.mxu0 0.0
        %867 = vmatpush1.msra.mxu0 %v801
        %868 = vmatprep.subr.mxu0 0.0
        %869 = vmatpush1.msra.mxu0 %v802
        %870 = vmatprep.subr.mxu0 0.0
        %871 = vmatpush1.msra.mxu0 %v803
        %872 = vmatprep.subr.mxu0 0.0
        %873 = vmatpush1.msra.mxu0 %v804
        %874 = vmatprep.subr.mxu0 0.0
        %875 = vmatpush1.msra.mxu0 %v805
        %876 = vmatprep.subr.mxu0 0.0
        %877 = vmatpush1.msra.mxu0 %v806
        %878 = vmatprep.mubr.f32.mxu0 %v774
        %879 = vmatmul.mubr.f32.gmra.mrb[0].mxu0 %v773
        %v880 = vpop.f32.mrb[0].mxu0
        %v881 = vadd.f32 %v812, %v880
        %v882 = vpop.f32.mrb[0].mxu0
        %883 = vdwg.mxu0
        %884 = vst [vmem:[%s434] sm:$0xff] %v881
        %s885 = sand.u32 %s216, 1
        %s886 = scalar_lea.sflag [#allocation5], %s885
        %s887 = sand.u32 %s216, 1
        %s888 = smul.addr %s887, 8
        %s889 = scalar_lea.vmem [#allocation12], %s888
        // Predicated region
        $region73: #{tpu_custom_call.1} parent=47 // pred_check
          %p890 = pneg %p226
        $region74: #{tpu_custom_call.1} parent=47 // pred_check_branch
          %892 = sbr.rel (%p890) target = $region76
        $region75: #{tpu_custom_call.1} parent=47 // pred_region
          %s894 = ssub.s32 128, 128
          %895 = vsyncadd %s886, %s894
          %s896 = sadd.s32 %s34, %s35
          %s897 = smul.addr %s896, 128
          %s898 = scalar_lea.hbm %s7, %s897
          %s900 = sshll.u32 %s889, 4
          %s901 = int_to_ptr.vmem [resolvable:$true] %s900
          %903 = dma.vmem_to_hbm [thread:$0]  %s901, 128, %s898, %s886
        $region76: #{tpu_custom_call.1} parent=47 // pred_fallthru
          _
        // Predicated region
        $region77: #{tpu_custom_call.1} parent=47 // pred_check
          %p904 = pneg %p252
        $region78: #{tpu_custom_call.1} parent=47 // pred_check_branch
          %906 = sbr.rel (%p904) target = $region80
        $region79: #{tpu_custom_call.1} parent=47 // pred_region
          %s908 = ssub.s32 128, 128
          %909 = vsyncadd [#allocation14], %s908
          %s910 = smul.addr %s34, 128
          %s911 = scalar_lea.hbm %s8, %s910
          %s913 = sshll.u32 [#allocation13], 4
          %s914 = int_to_ptr.vmem [resolvable:$true] %s913
          %916 = dma.vmem_to_hbm [thread:$0]  %s914, 128, %s911, [#allocation14]
        $region80: #{tpu_custom_call.1} parent=47 // pred_fallthru
          _
        // Predicated region
        $region81: #{tpu_custom_call.1} parent=47 // pred_check
          %p917 = pneg %p278
        $region82: #{tpu_custom_call.1} parent=47 // pred_check_branch
          %919 = sbr.rel (%p917) target = $region84
        $region83: #{tpu_custom_call.1} parent=47 // pred_region
          %s921 = ssub.s32 128, 128
          %922 = vsyncadd [#allocation14], %s921
          %s923 = smul.addr %s34, 128
          %s924 = scalar_lea.hbm %s9, %s923
          %s926 = sshll.u32 [#allocation15], 4
          %s927 = int_to_ptr.vmem [resolvable:$true] %s926
          %929 = dma.vmem_to_hbm [thread:$0]  %s927, 128, %s924, [#allocation14]
        $region84: #{tpu_custom_call.1} parent=47 // pred_fallthru
          _
        // Predicated region
        $region85: #{tpu_custom_call.1} parent=47 // pred_check
          %p930 = pneg %p252
        $region86: #{tpu_custom_call.1} parent=47 // pred_check_branch
          %932 = sbr.rel (%p930) target = $region88
        $region87: #{tpu_custom_call.1} parent=47 // pred_region
          %933 = dma.done [#allocation14], 128
        $region88: #{tpu_custom_call.1} parent=47 // pred_fallthru
          _
        // Predicated region
        $region89: #{tpu_custom_call.1} parent=47 // pred_check
          %p934 = pneg %p278
        $region90: #{tpu_custom_call.1} parent=47 // pred_check_branch
          %936 = sbr.rel (%p934) target = $region92
        $region91: #{tpu_custom_call.1} parent=47 // pred_region
          %937 = dma.done [#allocation14], 128
        $region92: #{tpu_custom_call.1} parent=47 // pred_fallthru
          _
      $region48: #{tpu_custom_call.1} parent=5 // pred_fallthru
        _
      %p938 = scmp.le.s32.totalorder 2, %s25
      // Predicated region
      $region93: #{tpu_custom_call.1} parent=5 // pred_check
        %p939 = pneg %p938
      $region94: #{tpu_custom_call.1} parent=5 // pred_check_branch
        %941 = sbr.rel (%p939) target = $region96
      $region95: #{tpu_custom_call.1} parent=5 // pred_region
        %s942 = ssub.s32 %s25, 2
        // Predicated region
        $region97: #{tpu_custom_call.1} parent=95 // pred_check
          %p943 = pneg %p232
        $region98: #{tpu_custom_call.1} parent=95 // pred_check_branch
          %945 = sbr.rel (%p943) target = $region100
        $region99: #{tpu_custom_call.1} parent=95 // pred_region
          %s946 = sand.u32 %s217, 1
          %s947 = scalar_lea.sflag [#allocation5], %s946
          %s948 = sand.u32 %s217, 1
          %s949 = smul.addr %s948, 8
          %s950 = scalar_lea.vmem [#allocation12], %s949
          %951 = dma.done %s947, 128
        $region100: #{tpu_custom_call.1} parent=95 // pred_fallthru
          _
      $region96: #{tpu_custom_call.1} parent=5 // pred_fallthru
        _
    $region6: #{tpu_custom_call.1} parent=1 // loop_footer
      %s29 = sadd.s32 1, %s25
    $region7: #{tpu_custom_call.1} parent=1 // loop_footer_branch
      %24 = sbr.rel target = $region3
    $region8: #{tpu_custom_call.1} parent=1 // loop_exit
      _
    %952 = vsyncpa [#allocation4], 1
    %s953 = scalar_lea.sflag [#allocation4], 1
    %954 = vsyncpa %s953, 1
    %955 = vsyncpa [#allocation7], 1
    %956 = vsyncpa [#allocation10], 1
    %957 = vsyncpa [#allocation5], 1
    %s958 = scalar_lea.sflag [#allocation5], 1
    %959 = vsyncpa %s958, 1
    %960 = vsyncpa [#allocation14], 1

</llo_original>
